<compile_context>
chip_gen: v6e
topology: v6e:2x2x1
jax: 0.10.0
libtpu: 0.0.40
codegen_flags: <defaults>
</compile_context>

<pallas_src>
import jax
import jax.numpy as jnp
from jax import lax
from jax.experimental import pallas as pl
from jax.experimental.pallas import tpu as pltpu

_LANES = 128
_SUBLANES = 8
_TARGET_BLOCK_BYTES = 4 * 1024 * 1024   # per pred/label input block
_VMEM_LIMIT_BYTES = 48 * 1024 * 1024    # fits v7x (64 MiB phys), ample on v5e/v6e


# ----------------------------------------------------------------------------
# Kernel
# ----------------------------------------------------------------------------
def _mask_weight_mse_kernel(pred_ref, label_ref, mask_ref, sq_ref, ms_ref):
    k = pl.program_id(1)
    tr, tn = pred_ref.shape

    @pl.when(k == 0)
    def _init():
        sq_ref[...] = jnp.zeros_like(sq_ref)
        # Mask block is full-width and resident across the chunk axis (its
        # index_map ignores k) -> reduce it exactly once per row block.
        mvals = mask_ref[...].astype(jnp.float32)
        ms_ref[...] = jnp.sum(mvals, axis=-1, keepdims=True)

    # --- stream this chunk through a small vreg window ----------------------
    num_slices = tn // _LANES                       # full 128-lane slices
    g_max = max(1, (4 * _SUBLANES) // max(tr, _SUBLANES))  # carry <= ~4 f32 vregs
    g = 1
    while num_slices and g * 2 <= g_max and num_slices % (g * 2) == 0:
        g *= 2
    inner = g * _LANES                              # 128..512 lanes per step
    groups = num_slices // g if num_slices else 0
    tail_off = num_slices * _LANES
    tail = tn - tail_off                            # ragged (<128) tail, rare

    def step(off, acc):
        p = pred_ref[:, pl.ds(off, inner)].astype(jnp.float32)
        l = label_ref[:, pl.ds(off, inner)].astype(jnp.float32)
        d = p - l
        return acc + d * d

    acc = jnp.zeros((tr, inner), jnp.float32)
    if groups > 0:
        if groups <= 8:
            # Static unroll: LLO scheduler sees every load/accumulate.
            for t in range(groups):
                acc = step(t * inner, acc)
        else:
            def body(t, a):
                return step(pl.multiple_of(t * inner, inner), a)
            acc = lax.fori_loop(0, groups, body, acc, unroll=8)

    # Fold the accumulator down to 128 lanes (lane-tile aligned adds).
    w = inner
    while w > _LANES:
        w //= 2
        acc = acc[:, :w] + acc[:, w:]

    if tail:  # static; only when the per-row length is not a multiple of 128
        pt = pred_ref[:, pl.ds(tail_off, tail)].astype(jnp.float32)
        lt = label_ref[:, pl.ds(tail_off, tail)].astype(jnp.float32)
        dt = pt - lt
        tsum = jnp.sum(dt * dt, axis=-1, keepdims=True)          # (tr, 1)
        lane = lax.broadcasted_iota(jnp.int32, (tr, _LANES), 1)
        acc = acc + jnp.where(lane == 0, tsum, jnp.float32(0.0))

    sq_ref[...] += acc


# ----------------------------------------------------------------------------
# Wrapper helpers
# ----------------------------------------------------------------------------
def _largest_divisor_leq(q, cap):
    cap = max(1, min(cap, q))
    for d in range(cap, 0, -1):
        if q % d == 0:
            return d
    return 1


def _choose_chunking(n, tr, itemsize):
    """Return (tn, num_chunks, n_padded). Prefers a divisor of n (no pad copy)."""
    cap_slices = max(1, _TARGET_BLOCK_BYTES // (tr * itemsize * _LANES))
    if n % _LANES == 0:
        q = n // _LANES
        d = _largest_divisor_leq(q, cap_slices)
        tn = d * _LANES
        # Accept unless the divisor tiling is pathologically fine-grained.
        if tn * tr * itemsize * 8 >= min(_TARGET_BLOCK_BYTES, n * tr * itemsize):
            return tn, q // d, n
    elif n * tr * itemsize <= 2 * _TARGET_BLOCK_BYTES:
        # Ragged width, but the whole row fits comfortably: one full-width
        # chunk; the kernel handles the <128-lane tail in-register.
        return n, 1, n
    # Last resort: pad columns so every chunk is an equal multiple of 128 lanes
    # (costs one extra HBM copy of pred/label; rare with image-shaped inputs).
    num_chunks = max(1, -(-(n * tr * itemsize) // _TARGET_BLOCK_BYTES))
    tn = -(-n // (num_chunks * _LANES)) * _LANES
    return tn, num_chunks, tn * num_chunks


# ----------------------------------------------------------------------------
# Public entry point
# ----------------------------------------------------------------------------
def mask_weight_mse(pred, label, mask, *, min_area=100):
    """pred: [B,C,H,W]; label: same #elements; mask: [B,Cm,H,W]. Returns [B] f32."""
    B, C = pred.shape[0], pred.shape[1]
    N = pred.size // B
    M = mask.size // B
    assert label.size == pred.size

    itemsize = jnp.dtype(pred.dtype).itemsize
    sub = _SUBLANES * max(1, 4 // itemsize)   # 8 rows f32 / 16 bf16 / 32 int8
    # Fold each sample over R rows so small batches fill vreg sublanes; for
    # B == 1 double it so the parallel row axis still has >= 2 blocks (v7x).
    R = sub * (2 if B == 1 else 1)
    while R > 1 and (N % R or M % R):
        R //= 2
    rows = B * R
    n = N // R
    m = M // R

    pred_r = pred.reshape(rows, n)
    label_r = label.reshape(rows, n)          # == label.view(pred.size())
    mask_r = mask.reshape(rows, m)

    if rows % sub == 0:
        tr = sub
    elif rows % _SUBLANES == 0:
        tr = _SUBLANES
    else:
        tr = rows                             # rare ragged fallback
    row_blocks = rows // tr

    tn, num_chunks, n_pad = _choose_chunking(n, tr, itemsize)
    if n_pad != n:                            # last resort only
        pred_r = jnp.pad(pred_r, ((0, 0), (0, n_pad - n)))
        label_r = jnp.pad(label_r, ((0, 0), (0, n_pad - n)))

    sq_part, ms_part = pl.pallas_call(
        _mask_weight_mse_kernel,
        out_shape=(
            jax.ShapeDtypeStruct((rows, _LANES), jnp.float32),
            jax.ShapeDtypeStruct((rows, 1), jnp.float32),
        ),
        grid=(row_blocks, num_chunks),
        in_specs=[
            pl.BlockSpec((tr, tn), lambda i, k: (i, k)),
            pl.BlockSpec((tr, tn), lambda i, k: (i, k)),
            pl.BlockSpec((tr, m), lambda i, k: (i, 0)),   # resident across chunks
        ],
        out_specs=(
            pl.BlockSpec((tr, _LANES), lambda i, k: (i, 0)),
            pl.BlockSpec((tr, 1), lambda i, k: (i, 0)),
        ),
        compiler_params=pltpu.CompilerParams(
            dimension_semantics=("parallel", "arbitrary"),
            vmem_limit_bytes=_VMEM_LIMIT_BYTES,
        ),
    )(pred_r, label_r, mask_r)

    # Tiny epilogue: (B, R*128) lane partials -> per-batch loss.
    sq = jnp.sum(sq_part.reshape(B, -1), axis=1)
    msum = jnp.sum(ms_part.reshape(B, -1), axis=1)
    denom = jnp.float32(C) * jnp.maximum(msum, jnp.float32(min_area))
    return sq / denom


def _reference(pred, label, mask, min_area=100):
    B, C = pred.shape[0], pred.shape[1]
    label = label.reshape(pred.shape)
    loss = jnp.sum((pred - label) ** 2, axis=(1, 2, 3))
    denom = C * jnp.maximum(jnp.sum(mask, axis=(1, 2, 3)), float(min_area))
    return loss / denom


if __name__ == "__main__":
    key = jax.random.PRNGKey(0)
    k1, k2, k3 = jax.random.split(key, 3)

    B, C, H, W = 2, 4, 16, 16
    pred = jax.random.normal(k1, (B, C, H, W), dtype=jnp.float32)
    label = jax.random.normal(k2, (B, C, H, W), dtype=jnp.float32)
    # binary-ish single-channel mask (as 'masks' in iharm)
    mask = (jax.random.uniform(k3, (B, 1, H, W)) > 0.5).astype(jnp.float32)

    out = jax.block_until_ready(mask_weight_mse(pred, label, mask, min_area=100))
    ref = _reference(pred, label, mask, min_area=100)

    assert out.shape == (B,)
    assert jnp.allclose(out, ref, rtol=1e-5, atol=1e-6), (out, ref)

    print("KERNEL_OK")
</pallas_src>

<mosaic_0001>
module attributes {stable_mosaic.version = 11 : i64} {
  func.func @_mask_weight_mse_kernel(%arg0: i32, %arg1: i32, %arg2: memref<8x128xf32, #tpu.memory_space<vmem>>, %arg3: memref<8x128xf32, #tpu.memory_space<vmem>>, %arg4: memref<8x32xf32, #tpu.memory_space<vmem>>, %arg5: memref<8x128xf32, #tpu.memory_space<vmem>>, %arg6: memref<8x1xf32, #tpu.memory_space<vmem>>) attributes {dimension_semantics = [#tpu.dimension_semantics<parallel>, #tpu.dimension_semantics<arbitrary>], iteration_bounds = array<i64: 2, 1>, scalar_prefetch = 0 : i64, scratch_operands = 0 : i64, tpu.core_type = #tpu.core_type<tc>, window_params = [{transform_indices = @transform_0, window_bounds = array<i64: 8, 128>}, {transform_indices = @transform_1, window_bounds = array<i64: 8, 128>}, {transform_indices = @transform_2, window_bounds = array<i64: 8, 32>}, {transform_indices = @transform_3, window_bounds = array<i64: 8, 128>}, {transform_indices = @transform_4, window_bounds = array<i64: 8, 1>}]} {
    %c0_i32 = arith.constant 0 : i32
    %0 = arith.cmpi eq, %arg1, %c0_i32 : i32
    %1 = arith.extui %0 : i1 to i32
    %c0_i32_0 = arith.constant 0 : i32
    %2 = arith.cmpi ne, %1, %c0_i32_0 : i32
    scf.if %2 {
      %cst_8 = arith.constant 0.000000e+00 : f32
      %12 = vector.broadcast %cst_8 : f32 to vector<8x128xf32>
      %c0_9 = arith.constant 0 : index
      %c0_10 = arith.constant 0 : index
      %13 = vector.load %arg5[%c0_9, %c0_10] : memref<8x128xf32, #tpu.memory_space<vmem>>, vector<8x128xf32>
      tpu.vector_store %arg5[%c0_9, %c0_10], %12 {strides = array<i32>} : memref<8x128xf32, #tpu.memory_space<vmem>>, vector<8x128xf32>,
      %c0_11 = arith.constant 0 : index
      %c0_12 = arith.constant 0 : index
      %14 = vector.load %arg4[%c0_11, %c0_12] : memref<8x32xf32, #tpu.memory_space<vmem>>, vector<8x32xf32>
      %cst_13 = arith.constant dense<0.000000e+00> : vector<8xf32>
      %15 = vector.multi_reduction <add>, %14, %cst_13 [1] : vector<8x32xf32> to vector<8xf32>
      %16 = vector.shape_cast %15 : vector<8xf32> to vector<8x1xf32>
      %c0_14 = arith.constant 0 : index
      %c0_15 = arith.constant 0 : index
      %17 = vector.load %arg6[%c0_14, %c0_15] : memref<8x1xf32, #tpu.memory_space<vmem>>, vector<8x1xf32>
      tpu.vector_store %arg6[%c0_14, %c0_15], %16 {strides = array<i32>} : memref<8x1xf32, #tpu.memory_space<vmem>>, vector<8x1xf32>,
    } else {
    }
    %cst = arith.constant 0.000000e+00 : f32
    %3 = vector.broadcast %cst : f32 to vector<8x128xf32>
    %c0 = arith.constant 0 : index
    %c0_1 = arith.constant 0 : index
    %4 = vector.load %arg2[%c0, %c0_1] : memref<8x128xf32, #tpu.memory_space<vmem>>, vector<8x128xf32>
    %c0_2 = arith.constant 0 : index
    %c0_3 = arith.constant 0 : index
    %5 = vector.load %arg3[%c0_2, %c0_3] : memref<8x128xf32, #tpu.memory_space<vmem>>, vector<8x128xf32>
    %6 = arith.subf %4, %5 : vector<8x128xf32>
    %7 = arith.mulf %6, %6 : vector<8x128xf32>
    %8 = arith.addf %3, %7 : vector<8x128xf32>
    %c0_4 = arith.constant 0 : index
    %c0_5 = arith.constant 0 : index
    %9 = vector.load %arg5[%c0_4, %c0_5] : memref<8x128xf32, #tpu.memory_space<vmem>>, vector<8x128xf32>
    %10 = arith.addf %9, %8 : vector<8x128xf32>
    %c0_6 = arith.constant 0 : index
    %c0_7 = arith.constant 0 : index
    %11 = vector.load %arg5[%c0_6, %c0_7] : memref<8x128xf32, #tpu.memory_space<vmem>>, vector<8x128xf32>
    tpu.vector_store %arg5[%c0_6, %c0_7], %10 {strides = array<i32>} : memref<8x128xf32, #tpu.memory_space<vmem>>, vector<8x128xf32>,
    return
  }
  func.func @transform_0(%arg0: i32, %arg1: i32) -> (i32, i32) {
    %c0_i32 = arith.constant 0 : i32
    return %arg0, %arg1 : i32, i32
  }
  func.func @transform_1(%arg0: i32, %arg1: i32) -> (i32, i32) {
    %c0_i32 = arith.constant 0 : i32
    return %arg0, %arg1 : i32, i32
  }
  func.func @transform_2(%arg0: i32, %arg1: i32) -> (i32, i32) {
    %c0_i32 = arith.constant 0 : i32
    %c0_i32_0 = arith.constant 0 : i32
    return %arg0, %c0_i32 : i32, i32
  }
  func.func @transform_3(%arg0: i32, %arg1: i32) -> (i32, i32) {
    %c0_i32 = arith.constant 0 : i32
    %c0_i32_0 = arith.constant 0 : i32
    return %arg0, %c0_i32 : i32, i32
  }
  func.func @transform_4(%arg0: i32, %arg1: i32) -> (i32, i32) {
    %c0_i32 = arith.constant 0 : i32
    %c0_i32_0 = arith.constant 0 : i32
    return %arg0, %c0_i32 : i32, i32
  }
}

</mosaic_0001>

<llo_original>
// kernel: tpu_custom_call.1
$region0: #{tpu_custom_call.1}
  #allocation0 [shape = 'u32[]', space=smem, size = 0x4, offset = 0x4, fixed_abs, tag = 'smem constant byte address 0x4 - core index']
  #allocation1 [shape = 'u32[144,128]{1,0:T(1,128)}', space=vmem, size = 0x12000, scoped, tag = 'internal scratch']
  %s0 = inlined_call_operand.hbm [shape: f32[16,128], index: 0, kind: input, shape index: {}]
  %s1 = inlined_call_operand.hbm [shape: f32[16,128], index: 1, kind: input, shape index: {}]
  %s2 = inlined_call_operand.hbm [shape: f32[16,32], index: 2, kind: input, shape index: {}]
  %s3 = inlined_call_operand.hbm [shape: f32[16,128], index: 3, kind: output, shape index: {0}]
  %s4 = inlined_call_operand.vmem [shape: f32[16,1], index: 4, kind: output, shape index: {1}]
  %5 = xla_tuple %s3, %s4
  %s6 = sld [smem:[#allocation0]]
  $region69: #{tpu_custom_call.1} parent=0
    _
  %s8 = ssub.s32 1, %s6
  %s9 = scalar_select 0, %s8, %s6
  $region1: #{tpu_custom_call.1} parent=0
    #allocation2 [shape = 'u8[8192]{0}', space=vmem, size = 0x2000, scoped, tag = 'input window, operand 0']
    #allocation3 [shape = 's32[2]{0}', space=sflag, size = 0x8, scoped, tag = 'scoped memory for tpu_custom_call.1']
    #allocation4 [shape = 's32[2]{0}', space=sflag, size = 0x8, scoped, tag = 'scoped memory for tpu_custom_call.1']
    #allocation5 [shape = 'u8[8192]{0}', space=vmem, size = 0x2000, scoped, tag = 'input window, operand 1']
    #allocation6 [shape = 's32[2]{0}', space=sflag, size = 0x8, scoped, tag = 'scoped memory for tpu_custom_call.1']
    #allocation7 [shape = 'u8[8192]{0}', space=vmem, size = 0x2000, scoped, tag = 'input window, operand 2']
    #allocation8 [shape = 'u8[8192]{0}', space=vmem, size = 0x2000, scoped, tag = 'output window, operand 0']
    %10 = vsyncpa [#allocation3], 0
    %s11 = scalar_lea.sflag [#allocation3], 1
    %12 = vsyncpa %s11, 0
    %13 = vsyncpa [#allocation6], 0
    %s14 = scalar_lea.sflag [#allocation6], 1
    %15 = vsyncpa %s14, 0
    %16 = vsyncpa [#allocation4], 0
    %s17 = scalar_lea.sflag [#allocation4], 1
    %18 = vsyncpa %s17, 0
    loop: start=0, step=1, limit=4
    $region2: #{tpu_custom_call.1} parent=1 // loop_pre_header
      _
    $region3: #{tpu_custom_call.1} parent=1 // loop_header
      %s20 = sphi 0, %s24
      %p21 = scmp.ge.s32.totalorder %s20, 4
      %s27 = sphi 0, %s39
      %s28 = sphi 0, %s35
      %s29 = sphi 0, %s27
      %s30 = sphi 0, %s28
      %s31 = sphi 0, %s29
      %s32 = sphi 0, %s30
      %s44 = sphi 0, %s46
      %s47 = sphi 0, %s44
      %s48 = sphi 0, %s47
      %s64 = sphi 0, %s48
      %s72 = sphi 0, %s74
      %s75 = sphi 0, %s72
      %s76 = sphi 0, %s75
      %s92 = sphi 0, %s76
      %s98 = sphi 0, %s100
      %s101 = sphi 0, %s98
      %s102 = sphi 0, %s101
      %s118 = sphi 0, %s102
      %s124 = sphi 0, %s126
      %s127 = sphi 0, %s124
      %s128 = sphi 0, %s127
      %s144 = sphi 0, %s128
      %s150 = sphi 0, %s152
      %s153 = sphi 0, %s150
      %s154 = sphi 0, %s153
      %s170 = sphi 0, %s154
    $region4: #{tpu_custom_call.1} parent=1 // loop_header_branch
      %23 = sbr.rel (%p21) target = $region8
    $region5: #{tpu_custom_call.1} parent=1 // loop_body
      %s25 = ssub.s32 %s20, 1
      %s26 = ssub.s32 %s20, 2
      %s33 = sadd.s32 1, %s28
      %p34 = scmp.ge.s32.totalorder %s33, 1
      %s35 = scalar_select %p34, 0, %s33
      %s36 = sadd.s32 1, %s27
      %s37 = scalar_select %p34, %s36, %s27
      %p38 = scmp.ge.s32.totalorder %s37, 2
      %s39 = scalar_select %p38, 0, %s37
      %s40 = ssub.s32 %s27, %s39
      %s41 = ssub.s32 %s28, %s35
      %s42 = sor.u32 %s40, %s41
      %p43 = scmp.eq.s32.totalorder %s42, 0
      %s45 = sadd.s32 %s44, 1
      %s46 = scalar_select %p43, %s44, %s45
      %p49 = pneg %p43
      %p50 = scmp.eq.s32.totalorder %s20, 1
      %p51 = por %p49, %p50
      %p52 = scmp.ne.s32.totalorder %s44, %s47
      %p53 = scmp.eq.s32.totalorder %s20, 0
      %p54 = por %p52, %p53
      %p55 = scmp.ne.s32.totalorder %s44, %s47
      %p56 = scmp.eq.s32.totalorder %s25, 1
      %p57 = por %p55, %p56
      %p58 = scmp.ne.s32.totalorder %s47, %s48
      %p59 = scmp.eq.s32.totalorder %s25, 0
      %p60 = por %p58, %p59
      %p61 = scmp.ne.s32.totalorder %s47, %s48
      %p62 = scmp.eq.s32.totalorder %s26, 1
      %p63 = por %p61, %p62
      %p65 = scmp.ne.s32.totalorder %s48, %s64
      %p66 = scmp.eq.s32.totalorder %s26, 0
      %p67 = por %p65, %p66
      %s68 = ssub.s32 %s27, %s39
      %s69 = ssub.s32 %s28, %s35
      %s70 = sor.u32 %s68, %s69
      %p71 = scmp.eq.s32.totalorder %s70, 0
      %s73 = sadd.s32 %s72, 1
      %s74 = scalar_select %p71, %s72, %s73
      %p77 = pneg %p71
      %p78 = scmp.eq.s32.totalorder %s20, 1
      %p79 = por %p77, %p78
      %p80 = scmp.ne.s32.totalorder %s72, %s75
      %p81 = scmp.eq.s32.totalorder %s20, 0
      %p82 = por %p80, %p81
      %p83 = scmp.ne.s32.totalorder %s72, %s75
      %p84 = scmp.eq.s32.totalorder %s25, 1
      %p85 = por %p83, %p84
      %p86 = scmp.ne.s32.totalorder %s75, %s76
      %p87 = scmp.eq.s32.totalorder %s25, 0
      %p88 = por %p86, %p87
      %p89 = scmp.ne.s32.totalorder %s75, %s76
      %p90 = scmp.eq.s32.totalorder %s26, 1
      %p91 = por %p89, %p90
      %p93 = scmp.ne.s32.totalorder %s76, %s92
      %p94 = scmp.eq.s32.totalorder %s26, 0
      %p95 = por %p93, %p94
      %s96 = ssub.s32 %s27, %s39
      %p97 = scmp.eq.s32.totalorder %s96, 0
      %s99 = sadd.s32 %s98, 1
      %s100 = scalar_select %p97, %s98, %s99
      %p103 = pneg %p97
      %p104 = scmp.eq.s32.totalorder %s20, 1
      %p105 = por %p103, %p104
      %p106 = scmp.ne.s32.totalorder %s98, %s101
      %p107 = scmp.eq.s32.totalorder %s20, 0
      %p108 = por %p106, %p107
      %p109 = scmp.ne.s32.totalorder %s98, %s101
      %p110 = scmp.eq.s32.totalorder %s25, 1
      %p111 = por %p109, %p110
      %p112 = scmp.ne.s32.totalorder %s101, %s102
      %p113 = scmp.eq.s32.totalorder %s25, 0
      %p114 = por %p112, %p113
      %p115 = scmp.ne.s32.totalorder %s101, %s102
      %p116 = scmp.eq.s32.totalorder %s26, 1
      %p117 = por %p115, %p116
      %p119 = scmp.ne.s32.totalorder %s102, %s118
      %p120 = scmp.eq.s32.totalorder %s26, 0
      %p121 = por %p119, %p120
      %s122 = ssub.s32 %s27, %s39
      %p123 = scmp.eq.s32.totalorder %s122, 0
      %s125 = sadd.s32 %s124, 1
      %s126 = scalar_select %p123, %s124, %s125
      %p129 = pneg %p123
      %p130 = scmp.eq.s32.totalorder %s20, 1
      %p131 = por %p129, %p130
      %p132 = scmp.ne.s32.totalorder %s124, %s127
      %p133 = scmp.eq.s32.totalorder %s20, 0
      %p134 = por %p132, %p133
      %p135 = scmp.ne.s32.totalorder %s124, %s127
      %p136 = scmp.eq.s32.totalorder %s25, 1
      %p137 = por %p135, %p136
      %p138 = scmp.ne.s32.totalorder %s127, %s128
      %p139 = scmp.eq.s32.totalorder %s25, 0
      %p140 = por %p138, %p139
      %p141 = scmp.ne.s32.totalorder %s127, %s128
      %p142 = scmp.eq.s32.totalorder %s26, 1
      %p143 = por %p141, %p142
      %p145 = scmp.ne.s32.totalorder %s128, %s144
      %p146 = scmp.eq.s32.totalorder %s26, 0
      %p147 = por %p145, %p146
      %s148 = ssub.s32 %s27, %s39
      %p149 = scmp.eq.s32.totalorder %s148, 0
      %s151 = sadd.s32 %s150, 1
      %s152 = scalar_select %p149, %s150, %s151
      %p155 = pneg %p149
      %p156 = scmp.eq.s32.totalorder %s20, 1
      %p157 = por %p155, %p156
      %p158 = scmp.ne.s32.totalorder %s150, %s153
      %p159 = scmp.eq.s32.totalorder %s20, 0
      %p160 = por %p158, %p159
      %p161 = scmp.ne.s32.totalorder %s150, %s153
      %p162 = scmp.eq.s32.totalorder %s25, 1
      %p163 = por %p161, %p162
      %p164 = scmp.ne.s32.totalorder %s153, %s154
      %p165 = scmp.eq.s32.totalorder %s25, 0
      %p166 = por %p164, %p165
      %p167 = scmp.ne.s32.totalorder %s153, %s154
      %p168 = scmp.eq.s32.totalorder %s26, 1
      %p169 = por %p167, %p168
      %p171 = scmp.ne.s32.totalorder %s154, %s170
      %p172 = scmp.eq.s32.totalorder %s26, 0
      %p173 = por %p171, %p172
      %p174 = scmp.le.s32.totalorder 1, %s20
      %p175 = scmp.lt.s32.totalorder %s20, 3
      %p176 = pnand %p174, %p175
      %p177 = pneg %p176
      // Predicated region
      $region9: #{tpu_custom_call.1} parent=5 // pred_check
        _
      $region10: #{tpu_custom_call.1} parent=5 // pred_check_branch
        %179 = sbr.rel (%p176) target = $region12
      $region11: #{tpu_custom_call.1} parent=5 // pred_region
        %s180 = ssub.s32 %s20, 1
      $region12: #{tpu_custom_call.1} parent=5 // pred_fallthru
        _
      %p181 = scmp.lt.s32.totalorder %s20, 2
      // Predicated region
      $region13: #{tpu_custom_call.1} parent=5 // pred_check
        %p182 = pneg %p181
      $region14: #{tpu_custom_call.1} parent=5 // pred_check_branch
        %184 = sbr.rel (%p182) target = $region16
      $region15: #{tpu_custom_call.1} parent=5 // pred_region
        // Predicated region
        $region17: #{tpu_custom_call.1} parent=15 // pred_check
          %p185 = pneg %p54
        $region18: #{tpu_custom_call.1} parent=15 // pred_check_branch
          %187 = sbr.rel (%p185) target = $region20
        $region19: #{tpu_custom_call.1} parent=15 // pred_region
          %s188 = sand.u32 %s44, 1
          %s189 = scalar_lea.sflag [#allocation3], %s188
          %s190 = sand.u32 %s44, 1
          %s191 = smul.addr %s190, 8
          %s192 = scalar_lea.vmem [#allocation2], %s191
          %s194 = ssub.s32 128, 128
          %195 = vsyncadd %s189, %s194
          %s196 = sadd.s32 %s28, %s27
          %s197 = smul.addr %s196, 128
          %s198 = scalar_lea.hbm %s0, %s197
          %s200 = sshll.u32 %s192, 4
          %s201 = int_to_ptr.vmem [resolvable:$true] %s200
          %203 = dma.hbm_to_vmem [thread:$0]  %s198, 128, %s201, %s189
        $region20: #{tpu_custom_call.1} parent=15 // pred_fallthru
          _
        // Predicated region
        $region21: #{tpu_custom_call.1} parent=15 // pred_check
          %p204 = pneg %p82
        $region22: #{tpu_custom_call.1} parent=15 // pred_check_branch
          %206 = sbr.rel (%p204) target = $region24
        $region23: #{tpu_custom_call.1} parent=15 // pred_region
          %s207 = sand.u32 %s20, 1
          %s208 = scalar_lea.sflag [#allocation6], %s207
          %s209 = sand.u32 %s72, 1
          %s210 = smul.addr %s209, 8
          %s211 = scalar_lea.vmem [#allocation5], %s210
          %s213 = ssub.s32 128, 128
          %214 = vsyncadd %s208, %s213
          %s215 = sadd.s32 %s28, %s27
          %s216 = smul.addr %s215, 128
          %s217 = scalar_lea.hbm %s1, %s216
          %s219 = sshll.u32 %s211, 4
          %s220 = int_to_ptr.vmem [resolvable:$true] %s219
          %222 = dma.hbm_to_vmem [thread:$0]  %s217, 128, %s220, %s208
        $region24: #{tpu_custom_call.1} parent=15 // pred_fallthru
          _
        // Predicated region
        $region25: #{tpu_custom_call.1} parent=15 // pred_check
          %p223 = pneg %p108
        $region26: #{tpu_custom_call.1} parent=15 // pred_check_branch
          %225 = sbr.rel (%p223) target = $region28
        $region27: #{tpu_custom_call.1} parent=15 // pred_region
          %s226 = sand.u32 %s20, 1
          %s227 = scalar_lea.sflag [#allocation6], %s226
          %s228 = sand.u32 %s98, 1
          %s229 = smul.addr %s228, 8
          %s230 = scalar_lea.vmem [#allocation7], %s229
          %s232 = ssub.s32 128, 128
          %233 = vsyncadd %s227, %s232
          %s234 = smul.addr %s27, 128
          %s235 = scalar_lea.hbm %s2, %s234
          %s237 = sshll.u32 %s230, 4
          %s238 = int_to_ptr.vmem [resolvable:$true] %s237
          %240 = dma.hbm_to_vmem [thread:$0]  %s235, 128, %s238, %s227
        $region28: #{tpu_custom_call.1} parent=15 // pred_fallthru
          _
      $region16: #{tpu_custom_call.1} parent=5 // pred_fallthru
        _
      %p241 = scmp.le.s32.totalorder 1, %s20
      %p242 = scmp.lt.s32.totalorder %s20, 3
      %p243 = pnand %p241, %p242
      %p244 = pneg %p243
      // Predicated region
      $region29: #{tpu_custom_call.1} parent=5 // pred_check
        _
      $region30: #{tpu_custom_call.1} parent=5 // pred_check_branch
        %246 = sbr.rel (%p243) target = $region32
      $region31: #{tpu_custom_call.1} parent=5 // pred_region
        %s247 = ssub.s32 %s20, 1
        %s248 = sand.u32 %s47, 1
        %s249 = scalar_lea.sflag [#allocation3], %s248
        %s250 = sand.u32 %s47, 1
        %s251 = smul.addr %s250, 8
        %s252 = scalar_lea.vmem [#allocation2], %s251
        // Predicated region
        $region33: #{tpu_custom_call.1} parent=31 // pred_check
          %p253 = pneg %p60
        $region34: #{tpu_custom_call.1} parent=31 // pred_check_branch
          %255 = sbr.rel (%p253) target = $region36
        $region35: #{tpu_custom_call.1} parent=31 // pred_region
          %256 = dma.done %s249, 128
        $region36: #{tpu_custom_call.1} parent=31 // pred_fallthru
          _
        %s257 = sand.u32 %s25, 1
        %s258 = scalar_lea.sflag [#allocation6], %s257
        %s259 = sand.u32 %s75, 1
        %s260 = smul.addr %s259, 8
        %s261 = scalar_lea.vmem [#allocation5], %s260
        // Predicated region
        $region37: #{tpu_custom_call.1} parent=31 // pred_check
          %p262 = pneg %p88
        $region38: #{tpu_custom_call.1} parent=31 // pred_check_branch
          %264 = sbr.rel (%p262) target = $region40
        $region39: #{tpu_custom_call.1} parent=31 // pred_region
          %265 = dma.done %s258, 128
        $region40: #{tpu_custom_call.1} parent=31 // pred_fallthru
          _
        %s266 = sand.u32 %s25, 1
        %s267 = scalar_lea.sflag [#allocation6], %s266
        %s268 = sand.u32 %s101, 1
        %s269 = smul.addr %s268, 8
        %s270 = scalar_lea.vmem [#allocation7], %s269
        // Predicated region
        $region41: #{tpu_custom_call.1} parent=31 // pred_check
          %p271 = pneg %p114
        $region42: #{tpu_custom_call.1} parent=31 // pred_check_branch
          %273 = sbr.rel (%p271) target = $region44
        $region43: #{tpu_custom_call.1} parent=31 // pred_region
          %274 = dma.done %s267, 128
        $region44: #{tpu_custom_call.1} parent=31 // pred_fallthru
          _
        %s275 = sand.u32 %s47, 1
        %s276 = scalar_lea.sflag [#allocation3], %s275
        %s277 = sand.u32 %s47, 1
        %s278 = smul.addr %s277, 8
        %s279 = scalar_lea.vmem [#allocation2], %s278
        %p280 = pneg %p60
        %p281 = pneg %p57
        %s282 = sand.u32 %s25, 1
        %s283 = scalar_lea.sflag [#allocation6], %s282
        %s284 = sand.u32 %s75, 1
        %s285 = smul.addr %s284, 8
        %s286 = scalar_lea.vmem [#allocation5], %s285
        %p287 = pneg %p88
        %p288 = pneg %p85
        %s289 = sand.u32 %s25, 1
        %s290 = scalar_lea.sflag [#allocation6], %s289
        %s291 = sand.u32 %s101, 1
        %s292 = smul.addr %s291, 8
        %s293 = scalar_lea.vmem [#allocation7], %s292
        %p294 = pneg %p114
        %p295 = pneg %p111
        %p296 = pneg %p140
        %p297 = pneg %p137
        %s298 = sand.u32 %s127, 1
        %s299 = scalar_lea.sflag [#allocation4], %s298
        %s300 = sand.u32 %s127, 1
        %s301 = smul.addr %s300, 8
        %s302 = scalar_lea.vmem [#allocation8], %s301
        %p303 = pneg %p166
        %p304 = pneg %p163
        %p305 = scmp.lt.s32.totalorder %s29, 1
        %s306 = scalar_select %p305, %s29, 1
        %s307 = smul.addr %s306, 8
        %s308 = scalar_lea.vmem %s4, %s307
        %p309 = scmp.lt.s32.totalorder %s29, 1
        %s310 = scalar_select %p309, %s29, 1
        %s311 = smul.addr %s310, 8
        %s312 = scalar_lea.vmem %s4, %s311
        %p313 = scmp.eq.s32.totalorder %s30, 0
        // Predicated region
        $region45: #{tpu_custom_call.1} parent=31 // pred_check
          %p314 = pneg %p313
        $region46: #{tpu_custom_call.1} parent=31 // pred_check_branch
          %316 = sbr.rel (%p314) target = $region48
        $region47: #{tpu_custom_call.1} parent=31 // pred_region
          %317 = vst [vmem:[%s302] sm:$0xff] 0.0
          %v318 = vld [vmem:[%s270] sm:$0xff]
          %vm319 = vcmask 261120
          %v320 = vsel %vm319, %v318, 0.0
          %321 = vadd.xlane.f32.xlu0 %v320
          %v322 = vpop.xlane.xlu0 %321
          %vm323 = vcmask 7168
          %324 = vst.msk [vmem:[%s312] sm:$0xff] %vm323, %v322
        $region48: #{tpu_custom_call.1} parent=31 // pred_fallthru
          _
        %v325 = vld [vmem:[%s252] sm:$0xff]
        %v326 = vld [vmem:[%s261] sm:$0xff]
        %v327 = vsub.f32 %v325, %v326
        %v328 = vmul.f32 %v327, %v327
        %v329 = vadd.f32 %v328, 0.0
        %v330 = vld [vmem:[%s302] sm:$0xff]
        %v331 = vadd.f32 %v330, %v329
        %332 = vst [vmem:[%s302] sm:$0xff] %v331
        %s333 = sand.u32 %s127, 1
        %s334 = scalar_lea.sflag [#allocation4], %s333
        %s335 = sand.u32 %s127, 1
        %s336 = smul.addr %s335, 8
        %s337 = scalar_lea.vmem [#allocation8], %s336
        %p338 = scmp.lt.s32.totalorder %s29, 1
        %s339 = scalar_select %p338, %s29, 1
        %s340 = smul.addr %s339, 8
        %s341 = scalar_lea.vmem %s4, %s340
        // Predicated region
        $region49: #{tpu_custom_call.1} parent=31 // pred_check
          %p342 = pneg %p137
        $region50: #{tpu_custom_call.1} parent=31 // pred_check_branch
          %344 = sbr.rel (%p342) target = $region52
        $region51: #{tpu_custom_call.1} parent=31 // pred_region
          %s346 = ssub.s32 128, 128
          %347 = vsyncadd %s334, %s346
          %s348 = smul.addr %s29, 128
          %s349 = scalar_lea.hbm %s3, %s348
          %s351 = sshll.u32 %s337, 4
          %s352 = int_to_ptr.vmem [resolvable:$true] %s351
          %354 = dma.vmem_to_hbm [thread:$0]  %s352, 128, %s349, %s334
        $region52: #{tpu_custom_call.1} parent=31 // pred_fallthru
          _
        // Predicated region
        $region53: #{tpu_custom_call.1} parent=31 // pred_check
          %p355 = pneg %p163
        $region54: #{tpu_custom_call.1} parent=31 // pred_check_branch
          %357 = sbr.rel (%p355) target = $region56
        $region55: #{tpu_custom_call.1} parent=31 // pred_region
          _
        $region56: #{tpu_custom_call.1} parent=31 // pred_fallthru
          _
      $region32: #{tpu_custom_call.1} parent=5 // pred_fallthru
        _
      %p358 = scmp.le.s32.totalorder 2, %s20
      // Predicated region
      $region57: #{tpu_custom_call.1} parent=5 // pred_check
        %p359 = pneg %p358
      $region58: #{tpu_custom_call.1} parent=5 // pred_check_branch
        %361 = sbr.rel (%p359) target = $region60
      $region59: #{tpu_custom_call.1} parent=5 // pred_region
        %s362 = ssub.s32 %s20, 2
        // Predicated region
        $region61: #{tpu_custom_call.1} parent=59 // pred_check
          %p363 = pneg %p143
        $region62: #{tpu_custom_call.1} parent=59 // pred_check_branch
          %365 = sbr.rel (%p363) target = $region64
        $region63: #{tpu_custom_call.1} parent=59 // pred_region
          %s366 = sand.u32 %s128, 1
          %s367 = scalar_lea.sflag [#allocation4], %s366
          %s368 = sand.u32 %s128, 1
          %s369 = smul.addr %s368, 8
          %s370 = scalar_lea.vmem [#allocation8], %s369
          %371 = dma.done %s367, 128
        $region64: #{tpu_custom_call.1} parent=59 // pred_fallthru
          _
        // Predicated region
        $region65: #{tpu_custom_call.1} parent=59 // pred_check
          %p372 = pneg %p169
        $region66: #{tpu_custom_call.1} parent=59 // pred_check_branch
          %374 = sbr.rel (%p372) target = $region68
        $region67: #{tpu_custom_call.1} parent=59 // pred_region
          %p375 = scmp.lt.s32.totalorder %s31, 1
          %s376 = scalar_select %p375, %s31, 1
          %s377 = smul.addr %s376, 8
          %s378 = scalar_lea.vmem %s4, %s377
        $region68: #{tpu_custom_call.1} parent=59 // pred_fallthru
          _
      $region60: #{tpu_custom_call.1} parent=5 // pred_fallthru
        _
    $region6: #{tpu_custom_call.1} parent=1 // loop_footer
      %s24 = sadd.s32 1, %s20
    $region7: #{tpu_custom_call.1} parent=1 // loop_footer_branch
      %19 = sbr.rel target = $region3
    $region8: #{tpu_custom_call.1} parent=1 // loop_exit
      _
    %379 = vsyncpa [#allocation3], 1
    %s380 = scalar_lea.sflag [#allocation3], 1
    %381 = vsyncpa %s380, 1
    %382 = vsyncpa [#allocation6], 1
    %s383 = scalar_lea.sflag [#allocation6], 1
    %384 = vsyncpa %s383, 1
    %385 = vsyncpa [#allocation4], 1
    %s386 = scalar_lea.sflag [#allocation4], 1
    %387 = vsyncpa %s386, 1

</llo_original>
